<compile_context>
chip_gen: v7x
topology: tpu7x:2x2x1
jax: 0.10.0
libtpu: 0.0.40
codegen_flags: <defaults>
</compile_context>

<pallas_src>
import jax
import jax.numpy as jnp
from jax.experimental import pallas as pl
from jax.experimental.pallas import tpu as pltpu


def _round_up(x, m):
    return (x + m - 1) // m * m


def _num_tensorcores():
    """Best-effort TensorCores-per-device (v7x exposes 2; default to 1)."""
    d = jax.devices()[0]
    for attr in ("num_cores", "core_count"):
        n = getattr(d, attr, None)
        if isinstance(n, int) and n > 0:
            return n
    return 1


def _choose_batch_tiling(b, n_cores, cap):
    """Pick the batch tile / grid.

    - Tiles as large as possible: each grid step costs ~0.35 us fixed
      pipeline overhead which dwarfs the per-tile compute here.
    - On multi-TC parts keep at least `n_cores` grid steps once b >= 16 so
      the "parallel" grid axis can shard across TensorCores (v7x).
    - tile_b is a multiple of 8 sublanes unless it covers the whole batch
      (a block equal to the full array dim is always layout-legal), so no
      wrapper-side padding of x is ever needed.
    """
    min_steps = n_cores if (n_cores > 1 and b >= 16) else 1
    tile = min(cap, _round_up(pl.cdiv(b, min_steps), 8))
    if tile >= b:
        tile = b
    return tile, pl.cdiv(b, tile)


def dqn_kernel(x_ref, w1_ref, b1_ref, w23_ref, b23_ref, out_ref):
    # hidden = relu(x @ W1 + b1); f32 accumulation regardless of weight dtype
    # (weights may be bf16 for the v5e MXU).
    x = x_ref[...].astype(w1_ref.dtype)
    h = jnp.dot(x, w1_ref[...],
                preferred_element_type=jnp.float32) + b1_ref[...]
    h = jnp.maximum(h, 0.0)
    # fused heads: [q_action | q_object | zero-pad] -> one lane-dense,
    # unmasked 128-wide store.
    q = jnp.dot(h.astype(w23_ref.dtype), w23_ref[...],
                preferred_element_type=jnp.float32) + b23_ref[...]
    out_ref[...] = q.astype(out_ref.dtype)


def fuse_dqn_params(params, weight_dtype=jnp.float32):
    """Fuse the two heads and pad: hidden only to 8 sublanes, fused head
    width to 128 lanes. Done once, outside the per-step forward. Optionally
    casts the matmul weights to bf16 (biases stay f32; accumulation is f32).
    Returns fused params plus (action_dim, object_dim) for output slicing."""
    w1, b1, w2, b2, w3, b3 = params
    k, h = w1.shape
    a = w2.shape[1]
    o = w3.shape[1]
    h_pad = _round_up(h, 8)          # sublane-align only; no 128 padding
    n_pad = _round_up(a + o, 128)    # lane-dense fused-head output

    w1p = jnp.pad(w1, ((0, 0), (0, h_pad - h))).astype(weight_dtype)
    b1p = jnp.pad(b1.reshape(1, h), ((0, 0), (0, h_pad - h)))
    w23 = jnp.concatenate([w2, w3], axis=1)
    w23p = jnp.pad(w23, ((0, h_pad - h),
                         (0, n_pad - (a + o)))).astype(weight_dtype)
    b23 = jnp.concatenate([b2.reshape(1, a), b3.reshape(1, o)], axis=1)
    b23p = jnp.pad(b23, ((0, 0), (0, n_pad - (a + o))))
    return (w1p, b1p, w23p, b23p), a, o


def dqn_forward(x, fused_params, action_dim, object_dim, tile_cap=1024):
    """Pallas DQN forward: returns (q_action, q_object)."""
    w1, b1, w23, b23 = fused_params
    b, k = x.shape
    h_pad = w1.shape[1]
    n_pad = w23.shape[1]

    tile_b, grid_b = _choose_batch_tiling(b, _num_tensorcores(), tile_cap)

    flops = 2 * b * (k * h_pad + h_pad * n_pad)
    bytes_accessed = (x.dtype.itemsize * b * k
                      + w1.dtype.itemsize * k * h_pad
                      + 4 * h_pad
                      + w23.dtype.itemsize * h_pad * n_pad
                      + 4 * n_pad
                      + 4 * b * n_pad)

    out = pl.pallas_call(
        dqn_kernel,
        out_shape=jax.ShapeDtypeStruct((b, n_pad), x.dtype),
        grid_spec=pltpu.PrefetchScalarGridSpec(
            num_scalar_prefetch=0,
            grid=(grid_b,),
            in_specs=[
                # x: tiled along batch only; last (ragged) block handled by
                # Pallas, no wrapper-side padding.
                pl.BlockSpec((tile_b, k), lambda i: (i, 0)),
                # weights / biases: constant index_map -> VMEM-resident
                pl.BlockSpec((k, h_pad), lambda i: (0, 0)),
                pl.BlockSpec((1, h_pad), lambda i: (0, 0)),
                pl.BlockSpec((h_pad, n_pad), lambda i: (0, 0)),
                pl.BlockSpec((1, n_pad), lambda i: (0, 0)),
            ],
            out_specs=pl.BlockSpec((tile_b, n_pad), lambda i: (i, 0)),
        ),
        compiler_params=pltpu.CompilerParams(
            dimension_semantics=("parallel",)),
        cost_estimate=pl.CostEstimate(
            flops=flops, transcendentals=0, bytes_accessed=bytes_accessed),
    )(x, w1, b1, w23, b23)

    # Slice the lane-padded fused output back into the two heads.
    q_action = out[:, :action_dim]
    q_object = out[:, action_dim:action_dim + object_dim]
    return q_action, q_object


def init_dqn_params(key, state_dim, action_dim, object_dim, hidden_size):
    """Deterministic synthetic parameter init (shapes match nn.Linear layers,
    stored transposed so the kernel computes y = x @ W + b)."""
    ks = jax.random.split(key, 6)
    scale1 = 1.0 / jnp.sqrt(state_dim)
    scale2 = 1.0 / jnp.sqrt(hidden_size)
    w1 = jax.random.uniform(ks[0], (state_dim, hidden_size), jnp.float32,
                            -scale1, scale1)
    b1 = jax.random.uniform(ks[1], (1, hidden_size), jnp.float32,
                            -scale1, scale1)
    w2 = jax.random.uniform(ks[2], (hidden_size, action_dim), jnp.float32,
                            -scale2, scale2)
    b2 = jax.random.uniform(ks[3], (1, action_dim), jnp.float32,
                            -scale2, scale2)
    w3 = jax.random.uniform(ks[4], (hidden_size, object_dim), jnp.float32,
                            -scale2, scale2)
    b3 = jax.random.uniform(ks[5], (1, object_dim), jnp.float32,
                            -scale2, scale2)
    return (w1, b1, w2, b2, w3, b3)


def dqn_reference(x, params):
    w1, b1, w2, b2, w3, b3 = params
    h = jnp.maximum(x @ w1 + b1, 0.0)
    return h @ w2 + b2, h @ w3 + b3


if __name__ == "__main__":
    # Small shapes consistent with the module's forward.
    batch = 8
    state_dim = 32
    hidden_size = 64
    action_dim = 16
    object_dim = 8

    key = jax.random.PRNGKey(0)
    k_x, k_p, k_x2 = jax.random.split(key, 3)
    x = jax.random.normal(k_x, (batch, state_dim), jnp.float32)
    params = init_dqn_params(k_p, state_dim, action_dim, object_dim,
                             hidden_size)
    ref_a, ref_o = dqn_reference(x, params)

    # --- exact path: f32 weights (bit-consistent with the reference) -------
    fused_f32, a_dim, o_dim = fuse_dqn_params(params, jnp.float32)
    fused_f32 = jax.tree_util.tree_map(jax.device_put, fused_f32)
    fwd = jax.jit(lambda xx, pp: dqn_forward(xx, pp, a_dim, o_dim))
    q_action, q_object = fwd(x, fused_f32)
    jax.block_until_ready((q_action, q_object))
    assert q_action.shape == (batch, action_dim)
    assert q_object.shape == (batch, object_dim)
    assert jnp.allclose(q_action, ref_a, atol=1e-5, rtol=1e-5)
    assert jnp.allclose(q_object, ref_o, atol=1e-5, rtol=1e-5)

    # --- mixed-precision path: bf16 weights, f32 accumulation (v5e MXU) ----
    fused_bf16, _, _ = fuse_dqn_params(params, jnp.bfloat16)
    fused_bf16 = jax.tree_util.tree_map(jax.device_put, fused_bf16)
    fwd_bf16 = jax.jit(lambda xx, pp: dqn_forward(xx, pp, a_dim, o_dim))
    qa16, qo16 = fwd_bf16(x, fused_bf16)
    jax.block_until_ready((qa16, qo16))
    assert jnp.allclose(qa16, ref_a, atol=3e-2, rtol=3e-2)
    assert jnp.allclose(qo16, ref_o, atol=3e-2, rtol=3e-2)

    # --- larger, non-divisible batch: multi-tile grid with a ragged last
    #     block and no wrapper-side jnp.pad of x ----------------------------
    big_b = 300
    xb = jax.random.normal(k_x2, (big_b, state_dim), jnp.float32)
    fwd_big = jax.jit(
        lambda xx, pp: dqn_forward(xx, pp, a_dim, o_dim, tile_cap=128))
    qa_b, qo_b = fwd_big(xb, fused_f32)
    jax.block_until_ready((qa_b, qo_b))
    rba, rbo = dqn_reference(xb, params)
    assert qa_b.shape == (big_b, action_dim)
    assert qo_b.shape == (big_b, object_dim)
    assert jnp.allclose(qa_b, rba, atol=1e-5, rtol=1e-5)
    assert jnp.allclose(qo_b, rbo, atol=1e-5, rtol=1e-5)

    print("KERNEL_OK")
</pallas_src>

<mosaic_0001>
module attributes {stable_mosaic.version = 11 : i64} {
  func.func @dqn_kernel(%arg0: i32, %arg1: memref<8x32xf32, #tpu.memory_space<vmem>>, %arg2: memref<32x64xf32, #tpu.memory_space<vmem>>, %arg3: memref<1x64xf32, #tpu.memory_space<vmem>>, %arg4: memref<64x128xf32, #tpu.memory_space<vmem>>, %arg5: memref<1x128xf32, #tpu.memory_space<vmem>>, %arg6: memref<8x128xf32, #tpu.memory_space<vmem>>) attributes {dimension_semantics = [#tpu.dimension_semantics<parallel>], iteration_bounds = array<i64: 1>, scalar_prefetch = 0 : i64, scratch_operands = 0 : i64, tpu.core_type = #tpu.core_type<tc>, window_params = [{transform_indices = @transform_0, window_bounds = array<i64: 8, 32>}, {pipeline_mode = #tpu.pipeline_mode<synchronous>, transform_indices = @transform_1, window_bounds = array<i64: 32, 64>}, {pipeline_mode = #tpu.pipeline_mode<synchronous>, transform_indices = @transform_2, window_bounds = array<i64: 1, 64>}, {pipeline_mode = #tpu.pipeline_mode<synchronous>, transform_indices = @transform_3, window_bounds = array<i64: 64, 128>}, {pipeline_mode = #tpu.pipeline_mode<synchronous>, transform_indices = @transform_4, window_bounds = array<i64: 1, 128>}, {transform_indices = @transform_5, window_bounds = array<i64: 8, 128>}]} {
    %c0 = arith.constant 0 : index
    %c0_0 = arith.constant 0 : index
    %0 = vector.load %arg1[%c0, %c0_0] : memref<8x32xf32, #tpu.memory_space<vmem>>, vector<8x32xf32>
    %c0_1 = arith.constant 0 : index
    %c0_2 = arith.constant 0 : index
    %1 = vector.load %arg2[%c0_1, %c0_2] : memref<32x64xf32, #tpu.memory_space<vmem>>, vector<32x64xf32>
    %cst = arith.constant dense<0.000000e+00> : vector<8x64xf32>
    %2 = tpu.matmul %0, %1, %cst {dimension_numbers = #tpu.dot_dimension_numbers<[1], [0], [0], [1], [0, 0, 1, 1], [], []>} : vector<8x32xf32>, vector<32x64xf32>, vector<8x64xf32> -> vector<8x64xf32>
    %c0_3 = arith.constant 0 : index
    %c0_4 = arith.constant 0 : index
    %3 = vector.load %arg3[%c0_3, %c0_4] : memref<1x64xf32, #tpu.memory_space<vmem>>, vector<1x64xf32>
    %4 = vector.broadcast %3 : vector<1x64xf32> to vector<8x64xf32>
    %5 = arith.addf %2, %4 : vector<8x64xf32>
    %cst_5 = arith.constant 0.000000e+00 : f32
    %6 = vector.broadcast %cst_5 : f32 to vector<8x64xf32>
    %7 = arith.maximumf %5, %6 : vector<8x64xf32>
    %c0_6 = arith.constant 0 : index
    %c0_7 = arith.constant 0 : index
    %8 = vector.load %arg4[%c0_6, %c0_7] : memref<64x128xf32, #tpu.memory_space<vmem>>, vector<64x128xf32>
    %cst_8 = arith.constant dense<0.000000e+00> : vector<8x128xf32>
    %9 = tpu.matmul %7, %8, %cst_8 {dimension_numbers = #tpu.dot_dimension_numbers<[1], [0], [0], [1], [0, 0, 1, 1], [], []>} : vector<8x64xf32>, vector<64x128xf32>, vector<8x128xf32> -> vector<8x128xf32>
    %c0_9 = arith.constant 0 : index
    %c0_10 = arith.constant 0 : index
    %10 = vector.load %arg5[%c0_9, %c0_10] : memref<1x128xf32, #tpu.memory_space<vmem>>, vector<1x128xf32>
    %11 = vector.broadcast %10 : vector<1x128xf32> to vector<8x128xf32>
    %12 = arith.addf %9, %11 : vector<8x128xf32>
    %c0_11 = arith.constant 0 : index
    %c0_12 = arith.constant 0 : index
    %13 = vector.load %arg6[%c0_11, %c0_12] : memref<8x128xf32, #tpu.memory_space<vmem>>, vector<8x128xf32>
    tpu.vector_store %arg6[%c0_11, %c0_12], %12 {strides = array<i32>} : memref<8x128xf32, #tpu.memory_space<vmem>>, vector<8x128xf32>,
    return
  }
  func.func @transform_0(%arg0: i32) -> (i32, i32) {
    %c0_i32 = arith.constant 0 : i32
    %c0_i32_0 = arith.constant 0 : i32
    return %arg0, %c0_i32 : i32, i32
  }
  func.func @transform_1(%arg0: i32) -> (i32, i32) {
    %c0_i32 = arith.constant 0 : i32
    %c0_i32_0 = arith.constant 0 : i32
    %c0_i32_1 = arith.constant 0 : i32
    return %c0_i32, %c0_i32_0 : i32, i32
  }
  func.func @transform_2(%arg0: i32) -> (i32, i32) {
    %c0_i32 = arith.constant 0 : i32
    %c0_i32_0 = arith.constant 0 : i32
    %c0_i32_1 = arith.constant 0 : i32
    return %c0_i32, %c0_i32_0 : i32, i32
  }
  func.func @transform_3(%arg0: i32) -> (i32, i32) {
    %c0_i32 = arith.constant 0 : i32
    %c0_i32_0 = arith.constant 0 : i32
    %c0_i32_1 = arith.constant 0 : i32
    return %c0_i32, %c0_i32_0 : i32, i32
  }
  func.func @transform_4(%arg0: i32) -> (i32, i32) {
    %c0_i32 = arith.constant 0 : i32
    %c0_i32_0 = arith.constant 0 : i32
    %c0_i32_1 = arith.constant 0 : i32
    return %c0_i32, %c0_i32_0 : i32, i32
  }
  func.func @transform_5(%arg0: i32) -> (i32, i32) {
    %c0_i32 = arith.constant 0 : i32
    %c0_i32_0 = arith.constant 0 : i32
    return %arg0, %c0_i32 : i32, i32
  }
}

</mosaic_0001>

<llo_original>
// kernel: _lambda_.1
$region0: #{_lambda_.1}
  #allocation0 [shape = 'u32[]', space=smem, size = 0x4, offset = 0x4, fixed_abs, tag = 'smem constant byte address 0x4 - core index']
  #allocation1 [shape = 'u32[144,128]{1,0:T(1,128)}', space=vmem, size = 0x12000, scoped, tag = 'internal scratch']
  %s0 = inlined_call_operand.hbm [shape: f32[8,32], index: 0, kind: input, shape index: {}]
  %s1 = inlined_call_operand.hbm [shape: f32[32,64], index: 1, kind: input, shape index: {}]
  %s2 = inlined_call_operand.vmem [shape: f32[1,64], index: 2, kind: input, shape index: {}]
  %s3 = inlined_call_operand.hbm [shape: f32[64,128], index: 3, kind: input, shape index: {}]
  %s4 = inlined_call_operand.vmem [shape: f32[1,128], index: 4, kind: input, shape index: {}]
  %s5 = inlined_call_operand.vmem [shape: f32[8,128], index: 5, kind: output, shape index: {}]
  %s6 = sld [smem:[#allocation0]]
  $region42: #{_lambda_.1} parent=0
    _
  %s8 = ssub.s32 1, %s6
  %s9 = scalar_select 0, %s8, %s6
  $region1: #{_lambda_.1} parent=0
    #allocation2 [shape = 'u8[4096]{0}', space=vmem, size = 0x1000, scoped, tag = 'input window, operand 0, single buffered']
    #allocation3 [shape = 's32[1]{0}', space=sflag, size = 0x4, scoped, tag = 'scoped memory for _lambda_.1']
    #allocation4 [shape = 'u8[16384]{0}', space=vmem, size = 0x4000, scoped, tag = 'input window, operand 1, single buffered']
    #allocation5 [shape = 's32[1]{0}', space=sflag, size = 0x4, scoped, tag = 'scoped memory for _lambda_.1']
    #allocation6 [shape = 'u8[32768]{0}', space=vmem, size = 0x8000, scoped, tag = 'input window, operand 3, single buffered']
    %10 = vsyncpa [#allocation3], 0
    %11 = vsyncpa [#allocation5], 0
    // Predicated region
    $region2: #{_lambda_.1} parent=1 // pred_check
      _
    $region3: #{_lambda_.1} parent=1 // pred_check_branch
      %13 = sbr.rel (0) target = $region5
    $region4: #{_lambda_.1} parent=1 // pred_region
      %s15 = ssub.s32 128, 128
      %16 = vsyncadd [#allocation3], %s15
      %s18 = sshll.u32 [#allocation2], 4
      %s19 = int_to_ptr.vmem [resolvable:$true] %s18
      %21 = dma.hbm_to_vmem [thread:$0]  %s0, 128, %s19, [#allocation3]
    $region5: #{_lambda_.1} parent=1 // pred_fallthru
      _
    // Predicated region
    $region6: #{_lambda_.1} parent=1 // pred_check
      _
    $region7: #{_lambda_.1} parent=1 // pred_check_branch
      %23 = sbr.rel (0) target = $region9
    $region8: #{_lambda_.1} parent=1 // pred_region
      %s25 = ssub.s32 512, 512
      %26 = vsyncadd [#allocation5], %s25
      %s27 = sshll.u32 [#allocation4], 4
      %s28 = int_to_ptr.vmem [resolvable:$true] %s27
      %33 = dma.hbm_to_vmem [thread:$0]  %s1, 512, %s28, [#allocation5], 128, 128, 8
    $region9: #{_lambda_.1} parent=1 // pred_fallthru
      _
    // Predicated region
    $region10: #{_lambda_.1} parent=1 // pred_check
      _
    $region11: #{_lambda_.1} parent=1 // pred_check_branch
      %35 = sbr.rel (0) target = $region13
    $region12: #{_lambda_.1} parent=1 // pred_region
      _
    $region13: #{_lambda_.1} parent=1 // pred_fallthru
      _
    // Predicated region
    $region14: #{_lambda_.1} parent=1 // pred_check
      _
    $region15: #{_lambda_.1} parent=1 // pred_check_branch
      %37 = sbr.rel (0) target = $region17
    $region16: #{_lambda_.1} parent=1 // pred_region
      %s39 = ssub.s32 1024, 1024
      %40 = vsyncadd [#allocation5], %s39
      %s41 = sshll.u32 [#allocation6], 4
      %s42 = int_to_ptr.vmem [resolvable:$true] %s41
      %47 = dma.hbm_to_vmem [thread:$0]  %s3, 1024, %s42, [#allocation5], 128, 128, 8
    $region17: #{_lambda_.1} parent=1 // pred_fallthru
      _
    // Predicated region
    $region18: #{_lambda_.1} parent=1 // pred_check
      _
    $region19: #{_lambda_.1} parent=1 // pred_check_branch
      %49 = sbr.rel (0) target = $region21
    $region20: #{_lambda_.1} parent=1 // pred_region
      _
    $region21: #{_lambda_.1} parent=1 // pred_fallthru
      _
    // Predicated region
    $region22: #{_lambda_.1} parent=1 // pred_check
      _
    $region23: #{_lambda_.1} parent=1 // pred_check_branch
      %51 = sbr.rel (0) target = $region25
    $region24: #{_lambda_.1} parent=1 // pred_region
      %52 = dma.done [#allocation3], 128
    $region25: #{_lambda_.1} parent=1 // pred_fallthru
      _
    // Predicated region
    $region26: #{_lambda_.1} parent=1 // pred_check
      _
    $region27: #{_lambda_.1} parent=1 // pred_check_branch
      %54 = sbr.rel (0) target = $region29
    $region28: #{_lambda_.1} parent=1 // pred_region
      %55 = dma.done [#allocation5], 512
    $region29: #{_lambda_.1} parent=1 // pred_fallthru
      _
    // Predicated region
    $region30: #{_lambda_.1} parent=1 // pred_check
      _
    $region31: #{_lambda_.1} parent=1 // pred_check_branch
      %57 = sbr.rel (0) target = $region33
    $region32: #{_lambda_.1} parent=1 // pred_region
      %58 = dma.done [#allocation5], 1024
    $region33: #{_lambda_.1} parent=1 // pred_fallthru
      _
    %v59 = vld [vmem:[#allocation2] sm:$0xff]
    %v60 = vld [vmem:[#allocation4] sm:$0xff]
    %v61 = vld [vmem:[#allocation4 + $0x8] sm:$0xff]
    %v62 = vld [vmem:[#allocation4 + $0x10] sm:$0xff]
    %v63 = vld [vmem:[#allocation4 + $0x18] sm:$0xff]
    %v64 = vld [vmem:[%s2] sm:$0x1]
    %v66 = vlaneseq
    %v67 = vshrl.u32 %v66, 7
    %v68 = vsub.s32 0, %v67
    %v69 = vrot.slane %v64, %v68
    %vm71 = vcmask 261120
    %v73 = vsel %vm71, %v59, 0
    %75 = vmatprep.subr.mxu0 0.0
    %76 = vmatpush1.msra.mxu0 %v60
    %77 = vmatprep.subr.mxu0 0.0
    %78 = vmatpush1.msra.mxu0 %v61
    %79 = vmatprep.subr.mxu0 0.0
    %80 = vmatpush1.msra.mxu0 %v62
    %81 = vmatprep.subr.mxu0 0.0
    %82 = vmatpush1.msra.mxu0 %v63
    %83 = vmatprep.subr.mxu0 0.0
    %84 = vmatpush1.msra.mxu0 0.0
    %85 = vmatprep.subr.mxu0 0.0
    %86 = vmatpush1.msra.mxu0 0.0
    %87 = vmatprep.subr.mxu0 0.0
    %88 = vmatpush1.msra.mxu0 0.0
    %89 = vmatprep.subr.mxu0 0.0
    %90 = vmatpush1.msra.mxu0 0.0
    %91 = vmatprep.subr.mxu0 0.0
    %92 = vmatpush1.msra.mxu0 0.0
    %93 = vmatprep.subr.mxu0 0.0
    %94 = vmatpush1.msra.mxu0 0.0
    %95 = vmatprep.subr.mxu0 0.0
    %96 = vmatpush1.msra.mxu0 0.0
    %97 = vmatprep.subr.mxu0 0.0
    %98 = vmatpush1.msra.mxu0 0.0
    %99 = vmatprep.subr.mxu0 0.0
    %100 = vmatpush1.msra.mxu0 0.0
    %101 = vmatprep.subr.mxu0 0.0
    %102 = vmatpush1.msra.mxu0 0.0
    %103 = vmatprep.subr.mxu0 0.0
    %104 = vmatpush1.msra.mxu0 0.0
    %105 = vmatprep.subr.mxu0 0.0
    %106 = vmatpush1.msra.mxu0 0.0
    %107 = vmatprep.subr.mxu0 0.0
    %108 = vmatpush1.msra.mxu0 0.0
    %109 = vmatprep.subr.mxu0 0.0
    %110 = vmatpush1.msra.mxu0 0.0
    %111 = vmatprep.subr.mxu0 0.0
    %112 = vmatpush1.msra.mxu0 0.0
    %113 = vmatprep.subr.mxu0 0.0
    %114 = vmatpush1.msra.mxu0 0.0
    %115 = vmatprep.subr.mxu0 0.0
    %116 = vmatpush1.msra.mxu0 0.0
    %117 = vmatprep.subr.mxu0 0.0
    %118 = vmatpush1.msra.mxu0 0.0
    %119 = vmatprep.subr.mxu0 0.0
    %120 = vmatpush1.msra.mxu0 0.0
    %121 = vmatprep.subr.mxu0 0.0
    %122 = vmatpush1.msra.mxu0 0.0
    %123 = vmatprep.subr.mxu0 0.0
    %124 = vmatpush1.msra.mxu0 0.0
    %125 = vmatprep.subr.mxu0 0.0
    %126 = vmatpush1.msra.mxu0 0.0
    %127 = vmatprep.subr.mxu0 0.0
    %128 = vmatpush1.msra.mxu0 0.0
    %129 = vmatprep.subr.mxu0 0.0
    %130 = vmatpush1.msra.mxu0 0.0
    %131 = vmatprep.subr.mxu0 0.0
    %132 = vmatpush1.msra.mxu0 0.0
    %133 = vmatprep.subr.mxu0 0.0
    %134 = vmatpush1.msra.mxu0 0.0
    %135 = vmatprep.subr.mxu0 0.0
    %136 = vmatpush1.msra.mxu0 0.0
    %137 = vmatprep.subr.mxu0 0.0
    %138 = vmatpush1.msra.mxu0 0.0
    %139 = vmatprep.mubr.f32.mxu0 0.0
    %140 = vmatmul.mubr.f32.gmra.mrb[0].mxu0 %v73
    %v141 = vpop.f32.mrb[0].mxu0
    %v142 = vadd.f32 %v69, %v141
    %v143 = vpop.f32.mrb[0].mxu0
    %144 = vdwg.mxu0
    %v145 = vmax.f32 %v142, 0.0
    %v146 = vld [vmem:[#allocation6] sm:$0xff]
    %v147 = vld [vmem:[#allocation6 + $0x8] sm:$0xff]
    %v148 = vld [vmem:[#allocation6 + $0x10] sm:$0xff]
    %v149 = vld [vmem:[#allocation6 + $0x18] sm:$0xff]
    %v150 = vld [vmem:[#allocation6 + $0x20] sm:$0xff]
    %v151 = vld [vmem:[#allocation6 + $0x28] sm:$0xff]
    %v152 = vld [vmem:[#allocation6 + $0x30] sm:$0xff]
    %v153 = vld [vmem:[#allocation6 + $0x38] sm:$0xff]
    %v154 = vld [vmem:[%s4] sm:$0x1]
    %v156 = vlaneseq
    %v157 = vshrl.u32 %v156, 7
    %v158 = vsub.s32 0, %v157
    %v159 = vrot.slane %v154, %v158
    %vm161 = vcmask 523264
    %v163 = vsel %vm161, %v145, 0
    %165 = vmatprep.subr.mxu0 0.0
    %166 = vmatpush1.msra.mxu0 %v146
    %167 = vmatprep.subr.mxu0 0.0
    %168 = vmatpush1.msra.mxu0 %v147
    %169 = vmatprep.subr.mxu0 0.0
    %170 = vmatpush1.msra.mxu0 %v148
    %171 = vmatprep.subr.mxu0 0.0
    %172 = vmatpush1.msra.mxu0 %v149
    %173 = vmatprep.subr.mxu0 0.0
    %174 = vmatpush1.msra.mxu0 %v150
    %175 = vmatprep.subr.mxu0 0.0
    %176 = vmatpush1.msra.mxu0 %v151
    %177 = vmatprep.subr.mxu0 0.0
    %178 = vmatpush1.msra.mxu0 %v152
    %179 = vmatprep.subr.mxu0 0.0
    %180 = vmatpush1.msra.mxu0 %v153
    %181 = vmatprep.subr.mxu0 0.0
    %182 = vmatpush1.msra.mxu0 0.0
    %183 = vmatprep.subr.mxu0 0.0
    %184 = vmatpush1.msra.mxu0 0.0
    %185 = vmatprep.subr.mxu0 0.0
    %186 = vmatpush1.msra.mxu0 0.0
    %187 = vmatprep.subr.mxu0 0.0
    %188 = vmatpush1.msra.mxu0 0.0
    %189 = vmatprep.subr.mxu0 0.0
    %190 = vmatpush1.msra.mxu0 0.0
    %191 = vmatprep.subr.mxu0 0.0
    %192 = vmatpush1.msra.mxu0 0.0
    %193 = vmatprep.subr.mxu0 0.0
    %194 = vmatpush1.msra.mxu0 0.0
    %195 = vmatprep.subr.mxu0 0.0
    %196 = vmatpush1.msra.mxu0 0.0
    %197 = vmatprep.subr.mxu0 0.0
    %198 = vmatpush1.msra.mxu0 0.0
    %199 = vmatprep.subr.mxu0 0.0
    %200 = vmatpush1.msra.mxu0 0.0
    %201 = vmatprep.subr.mxu0 0.0
    %202 = vmatpush1.msra.mxu0 0.0
    %203 = vmatprep.subr.mxu0 0.0
    %204 = vmatpush1.msra.mxu0 0.0
    %205 = vmatprep.subr.mxu0 0.0
    %206 = vmatpush1.msra.mxu0 0.0
    %207 = vmatprep.subr.mxu0 0.0
    %208 = vmatpush1.msra.mxu0 0.0
    %209 = vmatprep.subr.mxu0 0.0
    %210 = vmatpush1.msra.mxu0 0.0
    %211 = vmatprep.subr.mxu0 0.0
    %212 = vmatpush1.msra.mxu0 0.0
    %213 = vmatprep.subr.mxu0 0.0
    %214 = vmatpush1.msra.mxu0 0.0
    %215 = vmatprep.subr.mxu0 0.0
    %216 = vmatpush1.msra.mxu0 0.0
    %217 = vmatprep.subr.mxu0 0.0
    %218 = vmatpush1.msra.mxu0 0.0
    %219 = vmatprep.subr.mxu0 0.0
    %220 = vmatpush1.msra.mxu0 0.0
    %221 = vmatprep.subr.mxu0 0.0
    %222 = vmatpush1.msra.mxu0 0.0
    %223 = vmatprep.subr.mxu0 0.0
    %224 = vmatpush1.msra.mxu0 0.0
    %225 = vmatprep.subr.mxu0 0.0
    %226 = vmatpush1.msra.mxu0 0.0
    %227 = vmatprep.subr.mxu0 0.0
    %228 = vmatpush1.msra.mxu0 0.0
    %229 = vmatprep.mubr.f32.mxu0 0.0
    %230 = vmatmul.mubr.f32.gmra.mrb[0].mxu0 %v163
    %v231 = vpop.f32.mrb[0].mxu0
    %v232 = vadd.f32 %v159, %v231
    %v233 = vpop.f32.mrb[0].mxu0
    %234 = vdwg.mxu0
    %235 = vst [vmem:[%s5] sm:$0xff] %v232
    // Predicated region
    $region34: #{_lambda_.1} parent=1 // pred_check
      _
    $region35: #{_lambda_.1} parent=1 // pred_check_branch
      %237 = sbr.rel (0) target = $region37
    $region36: #{_lambda_.1} parent=1 // pred_region
      _
    $region37: #{_lambda_.1} parent=1 // pred_fallthru
      _
    // Predicated region
    $region38: #{_lambda_.1} parent=1 // pred_check
      _
    $region39: #{_lambda_.1} parent=1 // pred_check_branch
      %239 = sbr.rel (0) target = $region41
    $region40: #{_lambda_.1} parent=1 // pred_region
      _
    $region41: #{_lambda_.1} parent=1 // pred_fallthru
      _
    %240 = vsyncpa [#allocation3], 1
    %241 = vsyncpa [#allocation5], 1

</llo_original>
